<compile_context>
chip_gen: v7x
topology: tpu7x:2x2x1
jax: 0.10.0
libtpu: 0.0.40
codegen_flags: <defaults>
</compile_context>

<pallas_src>
import functools

import jax
import jax.numpy as jnp
from jax.experimental import pallas as pl
from jax.experimental.pallas import tpu as pltpu


def _mapper_kernel(x_ref, w1_ref, b1_ref, w2_ref, b2_ref, w3_ref, b3_ref, o_ref):
    # layer 1: Linear(input_dim -> h0)  (no activation, matches the module)
    h1 = jnp.dot(x_ref[...], w1_ref[...],
                 preferred_element_type=jnp.float32) + b1_ref[...]
    # cast back to weight dtype so bf16 mode keeps feeding bf16 to the MXU
    h1 = h1.astype(w2_ref.dtype)
    # layer 2: Linear(h0 -> h1) + ReLU
    h2 = jnp.dot(h1, w2_ref[...],
                 preferred_element_type=jnp.float32) + b2_ref[...]
    h2 = jnp.maximum(h2, 0.0).astype(w3_ref.dtype)
    # layer 3: Linear(h1 -> h2) + ReLU
    h3 = jnp.dot(h2, w3_ref[...],
                 preferred_element_type=jnp.float32) + b3_ref[...]
    o_ref[...] = jnp.maximum(h3, 0.0).astype(o_ref.dtype)


# 512-row tiles: ~4 MiB of double-buffered VMEM traffic for these layer sizes,
# safe under the default scoped VMEM on every generation (v5e 16 MiB,
# v6e/v7x 32 MiB) while saturating the 256-wide (v6e/v7x) / 128-wide (v5e) MXU.
_MAX_BLOCK_B = 512


@functools.partial(jax.jit, static_argnames=("block_b", "use_bf16"))
def mapper_forward(x, params, block_b=None, use_bf16=False):
    """Runs the fused 3-layer MLP in a single Pallas kernel.

    x: (B, input_dim) float32 (or (input_dim,) 1-D)
    params: dict with w1 (D,H0), b1 (1,H0), w2 (H0,H1), b2 (1,H1),
            w3 (H1,H2), b3 (1,H2)
    """
    w1, b1 = params["w1"], params["b1"]
    w2, b2 = params["w2"], params["b2"]
    w3, b3 = params["w3"], params["b3"]

    # Mimic torch's `if len(shape)==2: squeeze()` — only changes anything when
    # a singleton leading dim exists; we always feed the kernel a 2-D array.
    squeeze_out = False
    if x.ndim == 1:
        x = x[None, :]
        squeeze_out = True
    elif x.ndim == 2 and x.shape[0] == 1:
        squeeze_out = True

    B, D = x.shape
    H0 = w1.shape[1]
    H1 = w2.shape[1]
    H2 = w3.shape[1]

    if use_bf16:
        # Optional: halves weight/activation DMA bytes and avoids multi-pass
        # f32 MXU emulation; accumulation stays f32, biases stay f32.
        x = x.astype(jnp.bfloat16)
        w1 = w1.astype(jnp.bfloat16)
        w2 = w2.astype(jnp.bfloat16)
        w3 = w3.astype(jnp.bfloat16)

    # Adaptive batch tile: single grid step for small batches (whole problem
    # resident in VMEM), otherwise MXU-filling 512-row tiles.
    if block_b is None:
        if B <= _MAX_BLOCK_B:
            block_b = max(8, ((B + 7) // 8) * 8)
        else:
            block_b = _MAX_BLOCK_B

    # Pad batch up to a multiple of block_b (sublane-friendly); padded rows are
    # sliced off after the call.
    Bp = pl.cdiv(B, block_b) * block_b
    if Bp != B:
        x = jnp.pad(x, ((0, Bp - B), (0, 0)))

    grid = (Bp // block_b,)

    flops = 2 * Bp * (D * H0 + H0 * H1 + H1 * H2)
    bytes_accessed = (
        Bp * D * x.dtype.itemsize            # x in
        + Bp * H2 * 4                        # out
        + (D * H0 + H0 * H1 + H1 * H2) * w1.dtype.itemsize   # weights
        + (H0 + H1 + H2) * 4                 # biases
    )

    out = pl.pallas_call(
        _mapper_kernel,
        out_shape=jax.ShapeDtypeStruct((Bp, H2), jnp.float32),
        grid_spec=pltpu.PrefetchScalarGridSpec(
            num_scalar_prefetch=0,
            grid=grid,
            in_specs=[
                pl.BlockSpec((block_b, D), lambda i: (i, 0)),   # x tile
                pl.BlockSpec((D, H0), lambda i: (0, 0)),        # w1 (resident)
                pl.BlockSpec((1, H0), lambda i: (0, 0)),        # b1
                pl.BlockSpec((H0, H1), lambda i: (0, 0)),       # w2
                pl.BlockSpec((1, H1), lambda i: (0, 0)),        # b2
                pl.BlockSpec((H1, H2), lambda i: (0, 0)),       # w3
                pl.BlockSpec((1, H2), lambda i: (0, 0)),        # b3
            ],
            out_specs=pl.BlockSpec((block_b, H2), lambda i: (i, 0)),
        ),
        compiler_params=pltpu.CompilerParams(
            dimension_semantics=("parallel",)),
        cost_estimate=pl.CostEstimate(
            flops=flops, transcendentals=0, bytes_accessed=bytes_accessed),
    )(x, w1, b1, w2, b2, w3, b3)

    out = out[:B]
    if squeeze_out:
        out = out[0]
    return out


def init_mapper_params(key, input_dim=512, hid_layers=(128, 256, 128),
                       dtype=jnp.float32):
    """Deterministic synthetic parameters (same shapes as the torch module)."""
    dims = (input_dim,) + tuple(hid_layers)
    params = {}
    keys = jax.random.split(key, len(dims) - 1)
    for idx, (din, dout) in enumerate(zip(dims[:-1], dims[1:]), start=1):
        kw, kb = jax.random.split(keys[idx - 1])
        scale = 1.0 / jnp.sqrt(din)
        # stored as (in, out) == W^T of torch's nn.Linear weight (out, in)
        params[f"w{idx}"] = (jax.random.uniform(kw, (din, dout), dtype,
                                                minval=-1.0, maxval=1.0) * scale)
        params[f"b{idx}"] = (jax.random.uniform(kb, (1, dout), dtype,
                                                minval=-1.0, maxval=1.0) * scale)
    return params


def mapper_reference(x, params):
    """Plain-JAX reference (mirrors the torch Sequential)."""
    if x.ndim == 1:
        x = x[None, :]
    h = x @ params["w1"] + params["b1"]
    h = jnp.maximum(h @ params["w2"] + params["b2"], 0.0)
    h = jnp.maximum(h @ params["w3"] + params["b3"], 0.0)
    return h


if __name__ == "__main__":
    key = jax.random.PRNGKey(0)
    k_param, k_x = jax.random.split(key)

    input_dim = 512
    hid_layers = (128, 256, 128)

    params = init_mapper_params(k_param, input_dim, hid_layers)

    # Small batch: single grid step, whole problem resident in VMEM.
    x_small = jax.random.normal(k_x, (8, input_dim), dtype=jnp.float32)
    out_small = jax.block_until_ready(mapper_forward(x_small, params))
    ref_small = mapper_reference(x_small, params)
    assert out_small.shape == (8, hid_layers[-1]), out_small.shape
    assert jnp.allclose(out_small, ref_small, atol=1e-4, rtol=1e-4), \
        float(jnp.max(jnp.abs(out_small - ref_small)))

    # Larger batch: 512-row tiles, multi-step parallel grid (megacore on v7x).
    x_big = jax.random.normal(k_x, (1000, input_dim), dtype=jnp.float32)
    out_big = jax.block_until_ready(mapper_forward(x_big, params))
    ref_big = mapper_reference(x_big, params)
    assert out_big.shape == (1000, hid_layers[-1]), out_big.shape
    assert jnp.allclose(out_big, ref_big, atol=1e-4, rtol=1e-4), \
        float(jnp.max(jnp.abs(out_big - ref_big)))

    # torch `.squeeze()` path: (1, D) input -> 1-D output.
    out_one = jax.block_until_ready(mapper_forward(x_small[:1], params))
    assert out_one.shape == (hid_layers[-1],), out_one.shape
    assert jnp.allclose(out_one, ref_small[0], atol=1e-4, rtol=1e-4)

    print("KERNEL_OK")
</pallas_src>

<mosaic_0001>
module attributes {stable_mosaic.version = 11 : i64} {
  func.func @_mapper_kernel(%arg0: i32, %arg1: memref<8x512xf32, #tpu.memory_space<vmem>>, %arg2: memref<512x128xf32, #tpu.memory_space<vmem>>, %arg3: memref<1x128xf32, #tpu.memory_space<vmem>>, %arg4: memref<128x256xf32, #tpu.memory_space<vmem>>, %arg5: memref<1x256xf32, #tpu.memory_space<vmem>>, %arg6: memref<256x128xf32, #tpu.memory_space<vmem>>, %arg7: memref<1x128xf32, #tpu.memory_space<vmem>>, %arg8: memref<8x128xf32, #tpu.memory_space<vmem>>) attributes {dimension_semantics = [#tpu.dimension_semantics<parallel>], iteration_bounds = array<i64: 1>, scalar_prefetch = 0 : i64, scratch_operands = 0 : i64, tpu.core_type = #tpu.core_type<tc>, window_params = [{transform_indices = @transform_0, window_bounds = array<i64: 8, 512>}, {pipeline_mode = #tpu.pipeline_mode<synchronous>, transform_indices = @transform_1, window_bounds = array<i64: 512, 128>}, {pipeline_mode = #tpu.pipeline_mode<synchronous>, transform_indices = @transform_2, window_bounds = array<i64: 1, 128>}, {pipeline_mode = #tpu.pipeline_mode<synchronous>, transform_indices = @transform_3, window_bounds = array<i64: 128, 256>}, {pipeline_mode = #tpu.pipeline_mode<synchronous>, transform_indices = @transform_4, window_bounds = array<i64: 1, 256>}, {pipeline_mode = #tpu.pipeline_mode<synchronous>, transform_indices = @transform_5, window_bounds = array<i64: 256, 128>}, {pipeline_mode = #tpu.pipeline_mode<synchronous>, transform_indices = @transform_6, window_bounds = array<i64: 1, 128>}, {transform_indices = @transform_7, window_bounds = array<i64: 8, 128>}]} {
    %c0 = arith.constant 0 : index
    %c0_0 = arith.constant 0 : index
    %0 = vector.load %arg1[%c0, %c0_0] : memref<8x512xf32, #tpu.memory_space<vmem>>, vector<8x512xf32>
    %c0_1 = arith.constant 0 : index
    %c0_2 = arith.constant 0 : index
    %1 = vector.load %arg2[%c0_1, %c0_2] : memref<512x128xf32, #tpu.memory_space<vmem>>, vector<512x128xf32>
    %cst = arith.constant dense<0.000000e+00> : vector<8x128xf32>
    %2 = tpu.matmul %0, %1, %cst {dimension_numbers = #tpu.dot_dimension_numbers<[1], [0], [0], [1], [0, 0, 1, 1], [], []>} : vector<8x512xf32>, vector<512x128xf32>, vector<8x128xf32> -> vector<8x128xf32>
    %c0_3 = arith.constant 0 : index
    %c0_4 = arith.constant 0 : index
    %3 = vector.load %arg3[%c0_3, %c0_4] : memref<1x128xf32, #tpu.memory_space<vmem>>, vector<1x128xf32>
    %4 = vector.broadcast %3 : vector<1x128xf32> to vector<8x128xf32>
    %5 = arith.addf %2, %4 : vector<8x128xf32>
    %c0_5 = arith.constant 0 : index
    %c0_6 = arith.constant 0 : index
    %6 = vector.load %arg4[%c0_5, %c0_6] : memref<128x256xf32, #tpu.memory_space<vmem>>, vector<128x256xf32>
    %cst_7 = arith.constant dense<0.000000e+00> : vector<8x256xf32>
    %7 = tpu.matmul %5, %6, %cst_7 {dimension_numbers = #tpu.dot_dimension_numbers<[1], [0], [0], [1], [0, 0, 1, 1], [], []>} : vector<8x128xf32>, vector<128x256xf32>, vector<8x256xf32> -> vector<8x256xf32>
    %c0_8 = arith.constant 0 : index
    %c0_9 = arith.constant 0 : index
    %8 = vector.load %arg5[%c0_8, %c0_9] : memref<1x256xf32, #tpu.memory_space<vmem>>, vector<1x256xf32>
    %9 = vector.broadcast %8 : vector<1x256xf32> to vector<8x256xf32>
    %10 = arith.addf %7, %9 : vector<8x256xf32>
    %cst_10 = arith.constant 0.000000e+00 : f32
    %11 = vector.broadcast %cst_10 : f32 to vector<8x256xf32>
    %12 = arith.maximumf %10, %11 : vector<8x256xf32>
    %c0_11 = arith.constant 0 : index
    %c0_12 = arith.constant 0 : index
    %13 = vector.load %arg6[%c0_11, %c0_12] : memref<256x128xf32, #tpu.memory_space<vmem>>, vector<256x128xf32>
    %cst_13 = arith.constant dense<0.000000e+00> : vector<8x128xf32>
    %14 = tpu.matmul %12, %13, %cst_13 {dimension_numbers = #tpu.dot_dimension_numbers<[1], [0], [0], [1], [0, 0, 1, 1], [], []>} : vector<8x256xf32>, vector<256x128xf32>, vector<8x128xf32> -> vector<8x128xf32>
    %c0_14 = arith.constant 0 : index
    %c0_15 = arith.constant 0 : index
    %15 = vector.load %arg7[%c0_14, %c0_15] : memref<1x128xf32, #tpu.memory_space<vmem>>, vector<1x128xf32>
    %16 = vector.broadcast %15 : vector<1x128xf32> to vector<8x128xf32>
    %17 = arith.addf %14, %16 : vector<8x128xf32>
    %cst_16 = arith.constant 0.000000e+00 : f32
    %18 = vector.broadcast %cst_16 : f32 to vector<8x128xf32>
    %19 = arith.maximumf %17, %18 : vector<8x128xf32>
    %c0_17 = arith.constant 0 : index
    %c0_18 = arith.constant 0 : index
    %20 = vector.load %arg8[%c0_17, %c0_18] : memref<8x128xf32, #tpu.memory_space<vmem>>, vector<8x128xf32>
    tpu.vector_store %arg8[%c0_17, %c0_18], %19 {strides = array<i32>} : memref<8x128xf32, #tpu.memory_space<vmem>>, vector<8x128xf32>,
    return
  }
  func.func @transform_0(%arg0: i32) -> (i32, i32) {
    %c0_i32 = arith.constant 0 : i32
    %c0_i32_0 = arith.constant 0 : i32
    return %arg0, %c0_i32 : i32, i32
  }
  func.func @transform_1(%arg0: i32) -> (i32, i32) {
    %c0_i32 = arith.constant 0 : i32
    %c0_i32_0 = arith.constant 0 : i32
    %c0_i32_1 = arith.constant 0 : i32
    return %c0_i32, %c0_i32_0 : i32, i32
  }
  func.func @transform_2(%arg0: i32) -> (i32, i32) {
    %c0_i32 = arith.constant 0 : i32
    %c0_i32_0 = arith.constant 0 : i32
    %c0_i32_1 = arith.constant 0 : i32
    return %c0_i32, %c0_i32_0 : i32, i32
  }
  func.func @transform_3(%arg0: i32) -> (i32, i32) {
    %c0_i32 = arith.constant 0 : i32
    %c0_i32_0 = arith.constant 0 : i32
    %c0_i32_1 = arith.constant 0 : i32
    return %c0_i32, %c0_i32_0 : i32, i32
  }
  func.func @transform_4(%arg0: i32) -> (i32, i32) {
    %c0_i32 = arith.constant 0 : i32
    %c0_i32_0 = arith.constant 0 : i32
    %c0_i32_1 = arith.constant 0 : i32
    return %c0_i32, %c0_i32_0 : i32, i32
  }
  func.func @transform_5(%arg0: i32) -> (i32, i32) {
    %c0_i32 = arith.constant 0 : i32
    %c0_i32_0 = arith.constant 0 : i32
    %c0_i32_1 = arith.constant 0 : i32
    return %c0_i32, %c0_i32_0 : i32, i32
  }
  func.func @transform_6(%arg0: i32) -> (i32, i32) {
    %c0_i32 = arith.constant 0 : i32
    %c0_i32_0 = arith.constant 0 : i32
    %c0_i32_1 = arith.constant 0 : i32
    return %c0_i32, %c0_i32_0 : i32, i32
  }
  func.func @transform_7(%arg0: i32) -> (i32, i32) {
    %c0_i32 = arith.constant 0 : i32
    %c0_i32_0 = arith.constant 0 : i32
    return %arg0, %c0_i32 : i32, i32
  }
}

</mosaic_0001>

<llo_original>
// kernel: mapper_forward.1
$region0: #{mapper_forward.1}
  #allocation0 [shape = 'u32[]', space=smem, size = 0x4, offset = 0x4, fixed_abs, tag = 'smem constant byte address 0x4 - core index']
  #allocation1 [shape = 'u32[144,128]{1,0:T(1,128)}', space=vmem, size = 0x12000, scoped, tag = 'internal scratch']
  %s0 = inlined_call_operand.hbm [shape: f32[8,512], index: 0, kind: input, shape index: {}]
  %s1 = inlined_call_operand.hbm [shape: f32[512,128], index: 1, kind: input, shape index: {}]
  %s2 = inlined_call_operand.vmem [shape: f32[1,128], index: 2, kind: input, shape index: {}]
  %s3 = inlined_call_operand.hbm [shape: f32[128,256], index: 3, kind: input, shape index: {}]
  %s4 = inlined_call_operand.vmem [shape: f32[1,256], index: 4, kind: input, shape index: {}]
  %s5 = inlined_call_operand.hbm [shape: f32[256,128], index: 5, kind: input, shape index: {}]
  %s6 = inlined_call_operand.vmem [shape: f32[1,128], index: 6, kind: input, shape index: {}]
  %s7 = inlined_call_operand.hbm [shape: f32[8,128], index: 7, kind: output, shape index: {}]
  %s8 = sld [smem:[#allocation0]]
  $region54: #{mapper_forward.1} parent=0
    _
  %s10 = ssub.s32 1, %s8
  %s11 = scalar_select 0, %s10, %s8
  $region1: #{mapper_forward.1} parent=0
    #allocation2 [shape = 'u8[16384]{0}', space=vmem, size = 0x4000, scoped, tag = 'input window, operand 0, single buffered']
    #allocation3 [shape = 's32[1]{0}', space=sflag, size = 0x4, scoped, tag = 'scoped memory for mapper_forward.1']
    #allocation4 [shape = 's32[1]{0}', space=sflag, size = 0x4, scoped, tag = 'scoped memory for mapper_forward.1']
    #allocation5 [shape = 'u8[262144]{0}', space=vmem, size = 0x40000, scoped, tag = 'input window, operand 1, single buffered']
    #allocation6 [shape = 's32[1]{0}', space=sflag, size = 0x4, scoped, tag = 'scoped memory for mapper_forward.1']
    #allocation7 [shape = 'u8[131072]{0}', space=vmem, size = 0x20000, scoped, tag = 'input window, operand 3, single buffered']
    #allocation8 [shape = 'u8[131072]{0}', space=vmem, size = 0x20000, scoped, tag = 'input window, operand 5, single buffered']
    #allocation9 [shape = 's32[1]{0}', space=sflag, size = 0x4, scoped, tag = 'scoped memory for mapper_forward.1']
    #allocation10 [shape = 'u8[4096]{0}', space=vmem, size = 0x1000, scoped, tag = 'output window, operand 0, single buffered']
    %12 = vsyncpa [#allocation3], 0
    %13 = vsyncpa [#allocation6], 0
    %14 = vsyncpa [#allocation9], 0
    %15 = vsyncpa [#allocation4], 0
    // Predicated region
    $region2: #{mapper_forward.1} parent=1 // pred_check
      _
    $region3: #{mapper_forward.1} parent=1 // pred_check_branch
      %17 = sbr.rel (0) target = $region5
    $region4: #{mapper_forward.1} parent=1 // pred_region
      %s19 = ssub.s32 512, 512
      %20 = vsyncadd [#allocation3], %s19
      %s22 = sshll.u32 [#allocation2], 4
      %s23 = int_to_ptr.vmem [resolvable:$true] %s22
      %25 = dma.hbm_to_vmem [thread:$0]  %s0, 512, %s23, [#allocation3]
    $region5: #{mapper_forward.1} parent=1 // pred_fallthru
      _
    // Predicated region
    $region6: #{mapper_forward.1} parent=1 // pred_check
      _
    $region7: #{mapper_forward.1} parent=1 // pred_check_branch
      %27 = sbr.rel (0) target = $region9
    $region8: #{mapper_forward.1} parent=1 // pred_region
      %s29 = ssub.s32 8192, 8192
      %30 = vsyncadd [#allocation6], %s29
      %s31 = sshll.u32 [#allocation5], 4
      %s32 = int_to_ptr.vmem [resolvable:$true] %s31
      %37 = dma.hbm_to_vmem [thread:$0]  %s1, 8192, %s32, [#allocation6], 128, 128, 8
    $region9: #{mapper_forward.1} parent=1 // pred_fallthru
      _
    // Predicated region
    $region10: #{mapper_forward.1} parent=1 // pred_check
      _
    $region11: #{mapper_forward.1} parent=1 // pred_check_branch
      %39 = sbr.rel (0) target = $region13
    $region12: #{mapper_forward.1} parent=1 // pred_region
      _
    $region13: #{mapper_forward.1} parent=1 // pred_fallthru
      _
    // Predicated region
    $region14: #{mapper_forward.1} parent=1 // pred_check
      _
    $region15: #{mapper_forward.1} parent=1 // pred_check_branch
      %41 = sbr.rel (0) target = $region17
    $region16: #{mapper_forward.1} parent=1 // pred_region
      %s43 = ssub.s32 4096, 4096
      %44 = vsyncadd [#allocation6], %s43
      %s45 = sshll.u32 [#allocation7], 4
      %s46 = int_to_ptr.vmem [resolvable:$true] %s45
      %51 = dma.hbm_to_vmem [thread:$0]  %s3, 4096, %s46, [#allocation6], 256, 256, 16
    $region17: #{mapper_forward.1} parent=1 // pred_fallthru
      _
    // Predicated region
    $region18: #{mapper_forward.1} parent=1 // pred_check
      _
    $region19: #{mapper_forward.1} parent=1 // pred_check_branch
      %53 = sbr.rel (0) target = $region21
    $region20: #{mapper_forward.1} parent=1 // pred_region
      _
    $region21: #{mapper_forward.1} parent=1 // pred_fallthru
      _
    // Predicated region
    $region22: #{mapper_forward.1} parent=1 // pred_check
      _
    $region23: #{mapper_forward.1} parent=1 // pred_check_branch
      %55 = sbr.rel (0) target = $region25
    $region24: #{mapper_forward.1} parent=1 // pred_region
      %s57 = ssub.s32 4096, 4096
      %58 = vsyncadd [#allocation9], %s57
      %s59 = sshll.u32 [#allocation8], 4
      %s60 = int_to_ptr.vmem [resolvable:$true] %s59
      %65 = dma.hbm_to_vmem [thread:$0]  %s5, 4096, %s60, [#allocation9], 128, 128, 8
    $region25: #{mapper_forward.1} parent=1 // pred_fallthru
      _
    // Predicated region
    $region26: #{mapper_forward.1} parent=1 // pred_check
      _
    $region27: #{mapper_forward.1} parent=1 // pred_check_branch
      %67 = sbr.rel (0) target = $region29
    $region28: #{mapper_forward.1} parent=1 // pred_region
      _
    $region29: #{mapper_forward.1} parent=1 // pred_fallthru
      _
    // Predicated region
    $region30: #{mapper_forward.1} parent=1 // pred_check
      _
    $region31: #{mapper_forward.1} parent=1 // pred_check_branch
      %69 = sbr.rel (0) target = $region33
    $region32: #{mapper_forward.1} parent=1 // pred_region
      %70 = dma.done [#allocation3], 512
    $region33: #{mapper_forward.1} parent=1 // pred_fallthru
      _
    // Predicated region
    $region34: #{mapper_forward.1} parent=1 // pred_check
      _
    $region35: #{mapper_forward.1} parent=1 // pred_check_branch
      %72 = sbr.rel (0) target = $region37
    $region36: #{mapper_forward.1} parent=1 // pred_region
      %73 = dma.done [#allocation6], 8192
    $region37: #{mapper_forward.1} parent=1 // pred_fallthru
      _
    // Predicated region
    $region38: #{mapper_forward.1} parent=1 // pred_check
      _
    $region39: #{mapper_forward.1} parent=1 // pred_check_branch
      %75 = sbr.rel (0) target = $region41
    $region40: #{mapper_forward.1} parent=1 // pred_region
      %76 = dma.done [#allocation6], 4096
    $region41: #{mapper_forward.1} parent=1 // pred_fallthru
      _
    // Predicated region
    $region42: #{mapper_forward.1} parent=1 // pred_check
      _
    $region43: #{mapper_forward.1} parent=1 // pred_check_branch
      %78 = sbr.rel (0) target = $region45
    $region44: #{mapper_forward.1} parent=1 // pred_region
      %79 = dma.done [#allocation9], 4096
    $region45: #{mapper_forward.1} parent=1 // pred_fallthru
      _
    %v80 = vld [vmem:[#allocation2] sm:$0xff]
    %v81 = vld [vmem:[#allocation2 + $0x8] sm:$0xff]
    %v82 = vld [vmem:[#allocation2 + $0x10] sm:$0xff]
    %v83 = vld [vmem:[#allocation2 + $0x18] sm:$0xff]
    %v84 = vld [vmem:[#allocation5] sm:$0xff]
    %v85 = vld [vmem:[#allocation5 + $0x8] sm:$0xff]
    %v86 = vld [vmem:[#allocation5 + $0x10] sm:$0xff]
    %v87 = vld [vmem:[#allocation5 + $0x18] sm:$0xff]
    %v88 = vld [vmem:[#allocation5 + $0x20] sm:$0xff]
    %v89 = vld [vmem:[#allocation5 + $0x28] sm:$0xff]
    %v90 = vld [vmem:[#allocation5 + $0x30] sm:$0xff]
    %v91 = vld [vmem:[#allocation5 + $0x38] sm:$0xff]
    %v92 = vld [vmem:[#allocation5 + $0x40] sm:$0xff]
    %v93 = vld [vmem:[#allocation5 + $0x48] sm:$0xff]
    %v94 = vld [vmem:[#allocation5 + $0x50] sm:$0xff]
    %v95 = vld [vmem:[#allocation5 + $0x58] sm:$0xff]
    %v96 = vld [vmem:[#allocation5 + $0x60] sm:$0xff]
    %v97 = vld [vmem:[#allocation5 + $0x68] sm:$0xff]
    %v98 = vld [vmem:[#allocation5 + $0x70] sm:$0xff]
    %v99 = vld [vmem:[#allocation5 + $0x78] sm:$0xff]
    %v100 = vld [vmem:[#allocation5 + $0x80] sm:$0xff]
    %v101 = vld [vmem:[#allocation5 + $0x88] sm:$0xff]
    %v102 = vld [vmem:[#allocation5 + $0x90] sm:$0xff]
    %v103 = vld [vmem:[#allocation5 + $0x98] sm:$0xff]
    %v104 = vld [vmem:[#allocation5 + $0xa0] sm:$0xff]
    %v105 = vld [vmem:[#allocation5 + $0xa8] sm:$0xff]
    %v106 = vld [vmem:[#allocation5 + $0xb0] sm:$0xff]
    %v107 = vld [vmem:[#allocation5 + $0xb8] sm:$0xff]
    %v108 = vld [vmem:[#allocation5 + $0xc0] sm:$0xff]
    %v109 = vld [vmem:[#allocation5 + $0xc8] sm:$0xff]
    %v110 = vld [vmem:[#allocation5 + $0xd0] sm:$0xff]
    %v111 = vld [vmem:[#allocation5 + $0xd8] sm:$0xff]
    %v112 = vld [vmem:[#allocation5 + $0xe0] sm:$0xff]
    %v113 = vld [vmem:[#allocation5 + $0xe8] sm:$0xff]
    %v114 = vld [vmem:[#allocation5 + $0xf0] sm:$0xff]
    %v115 = vld [vmem:[#allocation5 + $0xf8] sm:$0xff]
    %v116 = vld [vmem:[#allocation5 + $0x100] sm:$0xff]
    %v117 = vld [vmem:[#allocation5 + $0x108] sm:$0xff]
    %v118 = vld [vmem:[#allocation5 + $0x110] sm:$0xff]
    %v119 = vld [vmem:[#allocation5 + $0x118] sm:$0xff]
    %v120 = vld [vmem:[#allocation5 + $0x120] sm:$0xff]
    %v121 = vld [vmem:[#allocation5 + $0x128] sm:$0xff]
    %v122 = vld [vmem:[#allocation5 + $0x130] sm:$0xff]
    %v123 = vld [vmem:[#allocation5 + $0x138] sm:$0xff]
    %v124 = vld [vmem:[#allocation5 + $0x140] sm:$0xff]
    %v125 = vld [vmem:[#allocation5 + $0x148] sm:$0xff]
    %v126 = vld [vmem:[#allocation5 + $0x150] sm:$0xff]
    %v127 = vld [vmem:[#allocation5 + $0x158] sm:$0xff]
    %v128 = vld [vmem:[#allocation5 + $0x160] sm:$0xff]
    %v129 = vld [vmem:[#allocation5 + $0x168] sm:$0xff]
    %v130 = vld [vmem:[#allocation5 + $0x170] sm:$0xff]
    %v131 = vld [vmem:[#allocation5 + $0x178] sm:$0xff]
    %v132 = vld [vmem:[#allocation5 + $0x180] sm:$0xff]
    %v133 = vld [vmem:[#allocation5 + $0x188] sm:$0xff]
    %v134 = vld [vmem:[#allocation5 + $0x190] sm:$0xff]
    %v135 = vld [vmem:[#allocation5 + $0x198] sm:$0xff]
    %v136 = vld [vmem:[#allocation5 + $0x1a0] sm:$0xff]
    %v137 = vld [vmem:[#allocation5 + $0x1a8] sm:$0xff]
    %v138 = vld [vmem:[#allocation5 + $0x1b0] sm:$0xff]
    %v139 = vld [vmem:[#allocation5 + $0x1b8] sm:$0xff]
    %v140 = vld [vmem:[#allocation5 + $0x1c0] sm:$0xff]
    %v141 = vld [vmem:[#allocation5 + $0x1c8] sm:$0xff]
    %v142 = vld [vmem:[#allocation5 + $0x1d0] sm:$0xff]
    %v143 = vld [vmem:[#allocation5 + $0x1d8] sm:$0xff]
    %v144 = vld [vmem:[#allocation5 + $0x1e0] sm:$0xff]
    %v145 = vld [vmem:[#allocation5 + $0x1e8] sm:$0xff]
    %v146 = vld [vmem:[#allocation5 + $0x1f0] sm:$0xff]
    %v147 = vld [vmem:[#allocation5 + $0x1f8] sm:$0xff]
    %v148 = vld [vmem:[%s2] sm:$0x1]
    %v150 = vlaneseq
    %v151 = vshrl.u32 %v150, 7
    %v152 = vsub.s32 0, %v151
    %v153 = vrot.slane %v148, %v152
    %155 = vmatprep.subr.mxu0 0.0
    %156 = vmatpush1.msra.mxu0 %v84
    %157 = vmatprep.subr.mxu0 0.0
    %158 = vmatpush1.msra.mxu0 %v85
    %159 = vmatprep.subr.mxu0 0.0
    %160 = vmatpush1.msra.mxu0 %v86
    %161 = vmatprep.subr.mxu0 0.0
    %162 = vmatpush1.msra.mxu0 %v87
    %163 = vmatprep.subr.mxu0 0.0
    %164 = vmatpush1.msra.mxu0 %v88
    %165 = vmatprep.subr.mxu0 0.0
    %166 = vmatpush1.msra.mxu0 %v89
    %167 = vmatprep.subr.mxu0 0.0
    %168 = vmatpush1.msra.mxu0 %v90
    %169 = vmatprep.subr.mxu0 0.0
    %170 = vmatpush1.msra.mxu0 %v91
    %171 = vmatprep.subr.mxu0 0.0
    %172 = vmatpush1.msra.mxu0 %v92
    %173 = vmatprep.subr.mxu0 0.0
    %174 = vmatpush1.msra.mxu0 %v93
    %175 = vmatprep.subr.mxu0 0.0
    %176 = vmatpush1.msra.mxu0 %v94
    %177 = vmatprep.subr.mxu0 0.0
    %178 = vmatpush1.msra.mxu0 %v95
    %179 = vmatprep.subr.mxu0 0.0
    %180 = vmatpush1.msra.mxu0 %v96
    %181 = vmatprep.subr.mxu0 0.0
    %182 = vmatpush1.msra.mxu0 %v97
    %183 = vmatprep.subr.mxu0 0.0
    %184 = vmatpush1.msra.mxu0 %v98
    %185 = vmatprep.subr.mxu0 0.0
    %186 = vmatpush1.msra.mxu0 %v99
    %187 = vmatprep.subr.mxu0 0.0
    %188 = vmatpush1.msra.mxu0 %v100
    %189 = vmatprep.subr.mxu0 0.0
    %190 = vmatpush1.msra.mxu0 %v101
    %191 = vmatprep.subr.mxu0 0.0
    %192 = vmatpush1.msra.mxu0 %v102
    %193 = vmatprep.subr.mxu0 0.0
    %194 = vmatpush1.msra.mxu0 %v103
    %195 = vmatprep.subr.mxu0 0.0
    %196 = vmatpush1.msra.mxu0 %v104
    %197 = vmatprep.subr.mxu0 0.0
    %198 = vmatpush1.msra.mxu0 %v105
    %199 = vmatprep.subr.mxu0 0.0
    %200 = vmatpush1.msra.mxu0 %v106
    %201 = vmatprep.subr.mxu0 0.0
    %202 = vmatpush1.msra.mxu0 %v107
    %203 = vmatprep.subr.mxu0 0.0
    %204 = vmatpush1.msra.mxu0 %v108
    %205 = vmatprep.subr.mxu0 0.0
    %206 = vmatpush1.msra.mxu0 %v109
    %207 = vmatprep.subr.mxu0 0.0
    %208 = vmatpush1.msra.mxu0 %v110
    %209 = vmatprep.subr.mxu0 0.0
    %210 = vmatpush1.msra.mxu0 %v111
    %211 = vmatprep.subr.mxu0 0.0
    %212 = vmatpush1.msra.mxu0 %v112
    %213 = vmatprep.subr.mxu0 0.0
    %214 = vmatpush1.msra.mxu0 %v113
    %215 = vmatprep.subr.mxu0 0.0
    %216 = vmatpush1.msra.mxu0 %v114
    %217 = vmatprep.subr.mxu0 0.0
    %218 = vmatpush1.msra.mxu0 %v115
    %219 = vmatprep.mubr.f32.mxu0 %v81
    %220 = vmatmul.mubr.f32.gmra.mrb[0].mxu0 %v80
    %v221 = vpop.f32.mrb[0].mxu0
    %v222 = vadd.f32 %v153, %v221
    %v223 = vpop.f32.mrb[0].mxu0
    %224 = vdwg.mxu0
    %225 = vmatprep.subr.mxu0 0.0
    %226 = vmatpush1.msra.mxu0 %v116
    %227 = vmatprep.subr.mxu0 0.0
    %228 = vmatpush1.msra.mxu0 %v117
    %229 = vmatprep.subr.mxu0 0.0
    %230 = vmatpush1.msra.mxu0 %v118
    %231 = vmatprep.subr.mxu0 0.0
    %232 = vmatpush1.msra.mxu0 %v119
    %233 = vmatprep.subr.mxu0 0.0
    %234 = vmatpush1.msra.mxu0 %v120
    %235 = vmatprep.subr.mxu0 0.0
    %236 = vmatpush1.msra.mxu0 %v121
    %237 = vmatprep.subr.mxu0 0.0
    %238 = vmatpush1.msra.mxu0 %v122
    %239 = vmatprep.subr.mxu0 0.0
    %240 = vmatpush1.msra.mxu0 %v123
    %241 = vmatprep.subr.mxu0 0.0
    %242 = vmatpush1.msra.mxu0 %v124
    %243 = vmatprep.subr.mxu0 0.0
    %244 = vmatpush1.msra.mxu0 %v125
    %245 = vmatprep.subr.mxu0 0.0
    %246 = vmatpush1.msra.mxu0 %v126
    %247 = vmatprep.subr.mxu0 0.0
    %248 = vmatpush1.msra.mxu0 %v127
    %249 = vmatprep.subr.mxu0 0.0
    %250 = vmatpush1.msra.mxu0 %v128
    %251 = vmatprep.subr.mxu0 0.0
    %252 = vmatpush1.msra.mxu0 %v129
    %253 = vmatprep.subr.mxu0 0.0
    %254 = vmatpush1.msra.mxu0 %v130
    %255 = vmatprep.subr.mxu0 0.0
    %256 = vmatpush1.msra.mxu0 %v131
    %257 = vmatprep.subr.mxu0 0.0
    %258 = vmatpush1.msra.mxu0 %v132
    %259 = vmatprep.subr.mxu0 0.0
    %260 = vmatpush1.msra.mxu0 %v133
    %261 = vmatprep.subr.mxu0 0.0
    %262 = vmatpush1.msra.mxu0 %v134
    %263 = vmatprep.subr.mxu0 0.0
    %264 = vmatpush1.msra.mxu0 %v135
    %265 = vmatprep.subr.mxu0 0.0
    %266 = vmatpush1.msra.mxu0 %v136
    %267 = vmatprep.subr.mxu0 0.0
    %268 = vmatpush1.msra.mxu0 %v137
    %269 = vmatprep.subr.mxu0 0.0
    %270 = vmatpush1.msra.mxu0 %v138
    %271 = vmatprep.subr.mxu0 0.0
    %272 = vmatpush1.msra.mxu0 %v139
    %273 = vmatprep.subr.mxu0 0.0
    %274 = vmatpush1.msra.mxu0 %v140
    %275 = vmatprep.subr.mxu0 0.0
    %276 = vmatpush1.msra.mxu0 %v141
    %277 = vmatprep.subr.mxu0 0.0
    %278 = vmatpush1.msra.mxu0 %v142
    %279 = vmatprep.subr.mxu0 0.0
    %280 = vmatpush1.msra.mxu0 %v143
    %281 = vmatprep.subr.mxu0 0.0
    %282 = vmatpush1.msra.mxu0 %v144
    %283 = vmatprep.subr.mxu0 0.0
    %284 = vmatpush1.msra.mxu0 %v145
    %285 = vmatprep.subr.mxu0 0.0
    %286 = vmatpush1.msra.mxu0 %v146
    %287 = vmatprep.subr.mxu0 0.0
    %288 = vmatpush1.msra.mxu0 %v147
    %289 = vmatprep.mubr.f32.mxu0 %v83
    %290 = vmatmul.mubr.f32.gmra.mrb[0].mxu0 %v82
    %v291 = vpop.f32.mrb[0].mxu0
    %v292 = vadd.f32 %v222, %v291
    %v293 = vpop.f32.mrb[0].mxu0
    %294 = vdwg.mxu0
    %v295 = vld [vmem:[#allocation7] sm:$0xff]
    %v296 = vld [vmem:[#allocation7 + $0x8] sm:$0xff]
    %v297 = vld [vmem:[#allocation7 + $0x10] sm:$0xff]
    %v298 = vld [vmem:[#allocation7 + $0x18] sm:$0xff]
    %v299 = vld [vmem:[#allocation7 + $0x20] sm:$0xff]
    %v300 = vld [vmem:[#allocation7 + $0x28] sm:$0xff]
    %v301 = vld [vmem:[#allocation7 + $0x30] sm:$0xff]
    %v302 = vld [vmem:[#allocation7 + $0x38] sm:$0xff]
    %v303 = vld [vmem:[#allocation7 + $0x40] sm:$0xff]
    %v304 = vld [vmem:[#allocation7 + $0x48] sm:$0xff]
    %v305 = vld [vmem:[#allocation7 + $0x50] sm:$0xff]
    %v306 = vld [vmem:[#allocation7 + $0x58] sm:$0xff]
    %v307 = vld [vmem:[#allocation7 + $0x60] sm:$0xff]
    %v308 = vld [vmem:[#allocation7 + $0x68] sm:$0xff]
    %v309 = vld [vmem:[#allocation7 + $0x70] sm:$0xff]
    %v310 = vld [vmem:[#allocation7 + $0x78] sm:$0xff]
    %v311 = vld [vmem:[#allocation7 + $0x80] sm:$0xff]
    %v312 = vld [vmem:[#allocation7 + $0x88] sm:$0xff]
    %v313 = vld [vmem:[#allocation7 + $0x90] sm:$0xff]
    %v314 = vld [vmem:[#allocation7 + $0x98] sm:$0xff]
    %v315 = vld [vmem:[#allocation7 + $0xa0] sm:$0xff]
    %v316 = vld [vmem:[#allocation7 + $0xa8] sm:$0xff]
    %v317 = vld [vmem:[#allocation7 + $0xb0] sm:$0xff]
    %v318 = vld [vmem:[#allocation7 + $0xb8] sm:$0xff]
    %v319 = vld [vmem:[#allocation7 + $0xc0] sm:$0xff]
    %v320 = vld [vmem:[#allocation7 + $0xc8] sm:$0xff]
    %v321 = vld [vmem:[#allocation7 + $0xd0] sm:$0xff]
    %v322 = vld [vmem:[#allocation7 + $0xd8] sm:$0xff]
    %v323 = vld [vmem:[#allocation7 + $0xe0] sm:$0xff]
    %v324 = vld [vmem:[#allocation7 + $0xe8] sm:$0xff]
    %v325 = vld [vmem:[#allocation7 + $0xf0] sm:$0xff]
    %v326 = vld [vmem:[#allocation7 + $0xf8] sm:$0xff]
    %v327 = vld [vmem:[%s4] sm:$0x3]
    %v329 = vlaneseq
    %v330 = vshrl.u32 %v329, 7
    %v331 = vsub.s32 0, %v330
    %v332 = vrot.slane %v327, %v331
    %v333 = vlaneseq
    %v334 = vshrl.u32 %v333, 7
    %v335 = vsub.s32 1, %v334
    %v336 = vrot.slane %v327, %v335
    %339 = vmatprep.subr.mxu0 %v296
    %340 = vmatpush1.msra.mxu0 %v295
    %341 = vmatprep.subr.mxu0 %v298
    %342 = vmatpush1.msra.mxu0 %v297
    %343 = vmatprep.subr.mxu0 %v300
    %344 = vmatpush1.msra.mxu0 %v299
    %345 = vmatprep.subr.mxu0 %v302
    %346 = vmatpush1.msra.mxu0 %v301
    %347 = vmatprep.subr.mxu0 %v304
    %348 = vmatpush1.msra.mxu0 %v303
    %349 = vmatprep.subr.mxu0 %v306
    %350 = vmatpush1.msra.mxu0 %v305
    %351 = vmatprep.subr.mxu0 %v308
    %352 = vmatpush1.msra.mxu0 %v307
    %353 = vmatprep.subr.mxu0 %v310
    %354 = vmatpush1.msra.mxu0 %v309
    %355 = vmatprep.subr.mxu0 %v312
    %356 = vmatpush1.msra.mxu0 %v311
    %357 = vmatprep.subr.mxu0 %v314
    %358 = vmatpush1.msra.mxu0 %v313
    %359 = vmatprep.subr.mxu0 %v316
    %360 = vmatpush1.msra.mxu0 %v315
    %361 = vmatprep.subr.mxu0 %v318
    %362 = vmatpush1.msra.mxu0 %v317
    %363 = vmatprep.subr.mxu0 %v320
    %364 = vmatpush1.msra.mxu0 %v319
    %365 = vmatprep.subr.mxu0 %v322
    %366 = vmatpush1.msra.mxu0 %v321
    %367 = vmatprep.subr.mxu0 %v324
    %368 = vmatpush1.msra.mxu0 %v323
    %369 = vmatprep.subr.mxu0 %v326
    %370 = vmatpush1.msra.mxu0 %v325
    %371 = vmatprep.subr.mxu0 0.0
    %372 = vmatpush1.msra.mxu0 0.0
    %373 = vmatprep.subr.mxu0 0.0
    %374 = vmatpush1.msra.mxu0 0.0
    %375 = vmatprep.subr.mxu0 0.0
    %376 = vmatpush1.msra.mxu0 0.0
    %377 = vmatprep.subr.mxu0 0.0
    %378 = vmatpush1.msra.mxu0 0.0
    %379 = vmatprep.subr.mxu0 0.0
    %380 = vmatpush1.msra.mxu0 0.0
    %381 = vmatprep.subr.mxu0 0.0
    %382 = vmatpush1.msra.mxu0 0.0
    %383 = vmatprep.subr.mxu0 0.0
    %384 = vmatpush1.msra.mxu0 0.0
    %385 = vmatprep.subr.mxu0 0.0
    %386 = vmatpush1.msra.mxu0 0.0
    %387 = vmatprep.subr.mxu0 0.0
    %388 = vmatpush1.msra.mxu0 0.0
    %389 = vmatprep.subr.mxu0 0.0
    %390 = vmatpush1.msra.mxu0 0.0
    %391 = vmatprep.subr.mxu0 0.0
    %392 = vmatpush1.msra.mxu0 0.0
    %393 = vmatprep.subr.mxu0 0.0
    %394 = vmatpush1.msra.mxu0 0.0
    %395 = vmatprep.subr.mxu0 0.0
    %396 = vmatpush1.msra.mxu0 0.0
    %397 = vmatprep.subr.mxu0 0.0
    %398 = vmatpush1.msra.mxu0 0.0
    %399 = vmatprep.subr.mxu0 0.0
    %400 = vmatpush1.msra.mxu0 0.0
    %401 = vmatprep.subr.mxu0 0.0
    %402 = vmatpush1.msra.mxu0 0.0
    %403 = vmatprep.mubr.f32.mxu0 0.0
    %404 = vmatmul.mubr.f32.gmra.mrb[0].mxu0 %v292
    %v405 = vpop.f32.mrb[0].mxu0
    %v406 = vadd.f32 %v332, %v405
    %v407 = vpop.f32.mrb[0].mxu0
    %v408 = vadd.f32 %v336, %v407
    %409 = vdwg.mxu0
    %v410 = vmax.f32 %v406, 0.0
    %v411 = vmax.f32 %v408, 0.0
    %v412 = vld [vmem:[#allocation8] sm:$0xff]
    %v413 = vld [vmem:[#allocation8 + $0x8] sm:$0xff]
    %v414 = vld [vmem:[#allocation8 + $0x10] sm:$0xff]
    %v415 = vld [vmem:[#allocation8 + $0x18] sm:$0xff]
    %v416 = vld [vmem:[#allocation8 + $0x20] sm:$0xff]
    %v417 = vld [vmem:[#allocation8 + $0x28] sm:$0xff]
    %v418 = vld [vmem:[#allocation8 + $0x30] sm:$0xff]
    %v419 = vld [vmem:[#allocation8 + $0x38] sm:$0xff]
    %v420 = vld [vmem:[#allocation8 + $0x40] sm:$0xff]
    %v421 = vld [vmem:[#allocation8 + $0x48] sm:$0xff]
    %v422 = vld [vmem:[#allocation8 + $0x50] sm:$0xff]
    %v423 = vld [vmem:[#allocation8 + $0x58] sm:$0xff]
    %v424 = vld [vmem:[#allocation8 + $0x60] sm:$0xff]
    %v425 = vld [vmem:[#allocation8 + $0x68] sm:$0xff]
    %v426 = vld [vmem:[#allocation8 + $0x70] sm:$0xff]
    %v427 = vld [vmem:[#allocation8 + $0x78] sm:$0xff]
    %v428 = vld [vmem:[#allocation8 + $0x80] sm:$0xff]
    %v429 = vld [vmem:[#allocation8 + $0x88] sm:$0xff]
    %v430 = vld [vmem:[#allocation8 + $0x90] sm:$0xff]
    %v431 = vld [vmem:[#allocation8 + $0x98] sm:$0xff]
    %v432 = vld [vmem:[#allocation8 + $0xa0] sm:$0xff]
    %v433 = vld [vmem:[#allocation8 + $0xa8] sm:$0xff]
    %v434 = vld [vmem:[#allocation8 + $0xb0] sm:$0xff]
    %v435 = vld [vmem:[#allocation8 + $0xb8] sm:$0xff]
    %v436 = vld [vmem:[#allocation8 + $0xc0] sm:$0xff]
    %v437 = vld [vmem:[#allocation8 + $0xc8] sm:$0xff]
    %v438 = vld [vmem:[#allocation8 + $0xd0] sm:$0xff]
    %v439 = vld [vmem:[#allocation8 + $0xd8] sm:$0xff]
    %v440 = vld [vmem:[#allocation8 + $0xe0] sm:$0xff]
    %v441 = vld [vmem:[#allocation8 + $0xe8] sm:$0xff]
    %v442 = vld [vmem:[#allocation8 + $0xf0] sm:$0xff]
    %v443 = vld [vmem:[#allocation8 + $0xf8] sm:$0xff]
    %v444 = vld [vmem:[%s6] sm:$0x1]
    %v446 = vlaneseq
    %v447 = vshrl.u32 %v446, 7
    %v448 = vsub.s32 0, %v447
    %v449 = vrot.slane %v444, %v448
    %451 = vmatprep.subr.mxu0 0.0
    %452 = vmatpush1.msra.mxu0 %v412
    %453 = vmatprep.subr.mxu0 0.0
    %454 = vmatpush1.msra.mxu0 %v413
    %455 = vmatprep.subr.mxu0 0.0
    %456 = vmatpush1.msra.mxu0 %v414
    %457 = vmatprep.subr.mxu0 0.0
    %458 = vmatpush1.msra.mxu0 %v415
    %459 = vmatprep.subr.mxu0 0.0
    %460 = vmatpush1.msra.mxu0 %v416
    %461 = vmatprep.subr.mxu0 0.0
    %462 = vmatpush1.msra.mxu0 %v417
    %463 = vmatprep.subr.mxu0 0.0
    %464 = vmatpush1.msra.mxu0 %v418
    %465 = vmatprep.subr.mxu0 0.0
    %466 = vmatpush1.msra.mxu0 %v419
    %467 = vmatprep.subr.mxu0 0.0
    %468 = vmatpush1.msra.mxu0 %v420
    %469 = vmatprep.subr.mxu0 0.0
    %470 = vmatpush1.msra.mxu0 %v421
    %471 = vmatprep.subr.mxu0 0.0
    %472 = vmatpush1.msra.mxu0 %v422
    %473 = vmatprep.subr.mxu0 0.0
    %474 = vmatpush1.msra.mxu0 %v423
    %475 = vmatprep.subr.mxu0 0.0
    %476 = vmatpush1.msra.mxu0 %v424
    %477 = vmatprep.subr.mxu0 0.0
    %478 = vmatpush1.msra.mxu0 %v425
    %479 = vmatprep.subr.mxu0 0.0
    %480 = vmatpush1.msra.mxu0 %v426
    %481 = vmatprep.subr.mxu0 0.0
    %482 = vmatpush1.msra.mxu0 %v427
    %483 = vmatprep.subr.mxu0 0.0
    %484 = vmatpush1.msra.mxu0 %v428
    %485 = vmatprep.subr.mxu0 0.0
    %486 = vmatpush1.msra.mxu0 %v429
    %487 = vmatprep.subr.mxu0 0.0
    %488 = vmatpush1.msra.mxu0 %v430
    %489 = vmatprep.subr.mxu0 0.0
    %490 = vmatpush1.msra.mxu0 %v431
    %491 = vmatprep.subr.mxu0 0.0
    %492 = vmatpush1.msra.mxu0 %v432
    %493 = vmatprep.subr.mxu0 0.0
    %494 = vmatpush1.msra.mxu0 %v433
    %495 = vmatprep.subr.mxu0 0.0
    %496 = vmatpush1.msra.mxu0 %v434
    %497 = vmatprep.subr.mxu0 0.0
    %498 = vmatpush1.msra.mxu0 %v435
    %499 = vmatprep.subr.mxu0 0.0
    %500 = vmatpush1.msra.mxu0 %v436
    %501 = vmatprep.subr.mxu0 0.0
    %502 = vmatpush1.msra.mxu0 %v437
    %503 = vmatprep.subr.mxu0 0.0
    %504 = vmatpush1.msra.mxu0 %v438
    %505 = vmatprep.subr.mxu0 0.0
    %506 = vmatpush1.msra.mxu0 %v439
    %507 = vmatprep.subr.mxu0 0.0
    %508 = vmatpush1.msra.mxu0 %v440
    %509 = vmatprep.subr.mxu0 0.0
    %510 = vmatpush1.msra.mxu0 %v441
    %511 = vmatprep.subr.mxu0 0.0
    %512 = vmatpush1.msra.mxu0 %v442
    %513 = vmatprep.subr.mxu0 0.0
    %514 = vmatpush1.msra.mxu0 %v443
    %515 = vmatprep.mubr.f32.mxu0 %v411
    %516 = vmatmul.mubr.f32.gmra.mrb[0].mxu0 %v410
    %v517 = vpop.f32.mrb[0].mxu0
    %v518 = vadd.f32 %v449, %v517
    %v519 = vpop.f32.mrb[0].mxu0
    %520 = vdwg.mxu0
    %v521 = vmax.f32 %v518, 0.0
    %522 = vst [vmem:[#allocation10] sm:$0xff] %v521
    // Predicated region
    $region46: #{mapper_forward.1} parent=1 // pred_check
      _
    $region47: #{mapper_forward.1} parent=1 // pred_check_branch
      %524 = sbr.rel (0) target = $region49
    $region48: #{mapper_forward.1} parent=1 // pred_region
      %s526 = ssub.s32 128, 128
      %527 = vsyncadd [#allocation4], %s526
      %s529 = sshll.u32 [#allocation10], 4
      %s530 = int_to_ptr.vmem [resolvable:$true] %s529
      %532 = dma.vmem_to_hbm [thread:$0]  %s530, 128, %s7, [#allocation4]
    $region49: #{mapper_forward.1} parent=1 // pred_fallthru
      _
    // Predicated region
    $region50: #{mapper_forward.1} parent=1 // pred_check
      _
    $region51: #{mapper_forward.1} parent=1 // pred_check_branch
      %534 = sbr.rel (0) target = $region53
    $region52: #{mapper_forward.1} parent=1 // pred_region
      %535 = dma.done [#allocation4], 128
    $region53: #{mapper_forward.1} parent=1 // pred_fallthru
      _
    %536 = vsyncpa [#allocation3], 1
    %537 = vsyncpa [#allocation6], 1
    %538 = vsyncpa [#allocation9], 1
    %539 = vsyncpa [#allocation4], 1

</llo_original>
